<compile_context>
chip_gen: v5e
topology: v5e:2x2
jax: 0.10.0
libtpu: 0.0.40
codegen_flags: <defaults>
</compile_context>

<pallas_src>
import jax
import jax.numpy as jnp
from jax.experimental import pallas as pl
from jax.experimental.pallas import tpu as pltpu

_LANES = 512          # lane-dense last dim: 4 * 128 lanes -> long contiguous DMA bursts
_MAX_TILE_ROWS = 256  # (256, 512) f32 tile = 512 KiB/buffer; 4 bufs x 2 (dbl-buf) ~ 4 MiB VMEM


def _round_up(x, m):
    return (x + m - 1) // m * m


def _plif_kernel(params_ref, v_ref, dv_ref, spike_ref, v_out_ref):
    # params_ref: SMEM (3,) f32 -> [inv_tau, v_threshold, v_reset]
    inv_tau = params_ref[0]
    v_th = params_ref[1]
    v_reset = params_ref[2]

    v_prev = v_ref[...]
    # membrane update: v + (dv - (v - v_reset)) / tau   (scalar reciprocal hoisted)
    v_new = v_prev + (dv_ref[...] - (v_prev - v_reset)) * inv_tau
    # surrogate forward = heaviside(v_new - v_threshold), strict '>' like torch x.gt(0)
    spike_bool = v_new > v_th
    spike_ref[...] = spike_bool.astype(spike_ref.dtype)
    # reset fused as a single select (idempotent; torch applies it twice via detach path)
    v_out_ref[...] = jnp.where(spike_bool, v_reset, v_new)


def plif_forward(dv, v_prev, tau=1.0, v_threshold=1.0, v_reset=0.0,
                 spike_dtype=jnp.float32):
    """One PLIF step. dv: NCHW float; v_prev: same shape (membrane state).
    Returns (spike, v_new), both shaped like dv.
    spike_dtype can be set to jnp.bfloat16 (0/1 exact) to cut HBM traffic further."""
    orig_shape = dv.shape
    total = dv.size

    # Flatten + pad to an exact number of (tile_rows, _LANES) tiles so every
    # grid step sees a full, unmasked, lane-dense block.
    rows_needed = pl.cdiv(total, _LANES)
    tile_rows = min(_MAX_TILE_ROWS, _round_up(rows_needed, 8))
    rows = _round_up(rows_needed, tile_rows)
    padded_total = rows * _LANES
    pad = padded_total - total

    dv_f = jnp.pad(dv.reshape(-1).astype(jnp.float32), (0, pad)).reshape(rows, _LANES)
    v_f = jnp.pad(v_prev.reshape(-1).astype(jnp.float32), (0, pad)).reshape(rows, _LANES)

    tau = jnp.asarray(tau, jnp.float32)
    params = jnp.stack([
        1.0 / tau,                                  # inv_tau (hoisted reciprocal)
        jnp.asarray(v_threshold, jnp.float32),
        jnp.asarray(v_reset, jnp.float32),
    ])

    grid = (rows // tile_rows,)
    vmem_spec = pl.BlockSpec((tile_rows, _LANES), lambda i: (i, 0))

    spike2, vnew2 = pl.pallas_call(
        _plif_kernel,
        grid=grid,
        in_specs=[
            pl.BlockSpec(memory_space=pltpu.SMEM),  # scalar params [inv_tau, v_th, v_reset]
            vmem_spec,                              # v_prev tile
            vmem_spec,                              # dv tile
        ],
        out_specs=[vmem_spec, vmem_spec],
        out_shape=[
            jax.ShapeDtypeStruct((rows, _LANES), spike_dtype),
            jax.ShapeDtypeStruct((rows, _LANES), jnp.float32),
        ],
        compiler_params=pltpu.CompilerParams(
            dimension_semantics=("parallel",)),     # data-parallel rows -> both TCs on v7x
    )(params, v_f, dv_f)

    spike = spike2.reshape(-1)[:total].reshape(orig_shape)
    v_new = vnew2.reshape(-1)[:total].reshape(orig_shape)
    return spike, v_new


def _plif_ref(dv, v_prev, tau, v_threshold, v_reset):
    v = v_prev + (dv - (v_prev - v_reset)) / tau
    spike = (v > v_threshold).astype(jnp.float32)
    v_out = (1.0 - spike) * v + spike * v_reset
    return spike, v_out


if __name__ == "__main__":
    key = jax.random.PRNGKey(0)

    # --- case 1: small NCHW activation map, default PLIF params ---------------
    N, C, H, W = 2, 4, 16, 16
    dv = jax.random.normal(key, (N, C, H, W), dtype=jnp.float32) * 2.0
    tau, v_threshold, v_reset = 1.0, 1.0, 0.0
    v_prev = jnp.zeros((N, C, H, W), dtype=jnp.float32)

    spike, v_new = plif_forward(dv, v_prev, tau, v_threshold, v_reset)
    spike = jax.block_until_ready(spike)
    v_new = jax.block_until_ready(v_new)

    spike_r, v_r = _plif_ref(dv, v_prev, tau, v_threshold, v_reset)
    assert spike.shape == (N, C, H, W) and v_new.shape == (N, C, H, W)
    assert jnp.allclose(spike, spike_r), "spike mismatch (case 1)"
    assert jnp.allclose(v_new, v_r), "state mismatch (case 1)"

    # --- case 2: non-128-divisible shape exercises the padding path -----------
    dv2 = jax.random.normal(jax.random.PRNGKey(1), (2, 3, 5, 7), dtype=jnp.float32)
    v_prev2 = jax.random.normal(jax.random.PRNGKey(2), (2, 3, 5, 7), dtype=jnp.float32) * 0.3
    tau2, v_th2, v_reset2 = 2.0, 0.5, 0.0  # 1/tau exact in f32

    spike2, v_new2 = plif_forward(dv2, v_prev2, tau2, v_th2, v_reset2)
    spike2 = jax.block_until_ready(spike2)
    v_new2 = jax.block_until_ready(v_new2)

    spike2_r, v2_r = _plif_ref(dv2, v_prev2, tau2, v_th2, v_reset2)
    assert jnp.allclose(spike2, spike2_r), "spike mismatch (case 2)"
    assert jnp.allclose(v_new2, v2_r), "state mismatch (case 2)"

    print("KERNEL_OK")
</pallas_src>

<mosaic_0001>
module attributes {stable_mosaic.version = 11 : i64} {
  func.func @_plif_kernel(%arg0: i32, %arg1: memref<3xf32, #tpu.memory_space<smem>>, %arg2: memref<8x512xf32, #tpu.memory_space<vmem>>, %arg3: memref<8x512xf32, #tpu.memory_space<vmem>>, %arg4: memref<8x512xf32, #tpu.memory_space<vmem>>, %arg5: memref<8x512xf32, #tpu.memory_space<vmem>>) attributes {dimension_semantics = [#tpu.dimension_semantics<parallel>], iteration_bounds = array<i64: 1>, scalar_prefetch = 0 : i64, scratch_operands = 0 : i64, tpu.core_type = #tpu.core_type<tc>, window_params = [{transform_indices = @transform_0, window_bounds = array<i64: 3>}, {transform_indices = @transform_1, window_bounds = array<i64: 8, 512>}, {transform_indices = @transform_2, window_bounds = array<i64: 8, 512>}, {transform_indices = @transform_3, window_bounds = array<i64: 8, 512>}, {transform_indices = @transform_4, window_bounds = array<i64: 8, 512>}]} {
    %c0 = arith.constant 0 : index
    %0 = memref.load %arg1[%c0] : memref<3xf32, #tpu.memory_space<smem>>
    %c1 = arith.constant 1 : index
    %1 = memref.load %arg1[%c1] : memref<3xf32, #tpu.memory_space<smem>>
    %c2 = arith.constant 2 : index
    %2 = memref.load %arg1[%c2] : memref<3xf32, #tpu.memory_space<smem>>
    %c0_0 = arith.constant 0 : index
    %c0_1 = arith.constant 0 : index
    %3 = vector.load %arg2[%c0_0, %c0_1] : memref<8x512xf32, #tpu.memory_space<vmem>>, vector<8x512xf32>
    %c0_2 = arith.constant 0 : index
    %c0_3 = arith.constant 0 : index
    %4 = vector.load %arg3[%c0_2, %c0_3] : memref<8x512xf32, #tpu.memory_space<vmem>>, vector<8x512xf32>
    %5 = vector.broadcast %2 : f32 to vector<8x512xf32>
    %6 = arith.subf %3, %5 : vector<8x512xf32>
    %7 = arith.subf %4, %6 : vector<8x512xf32>
    %8 = vector.broadcast %0 : f32 to vector<8x512xf32>
    %9 = arith.mulf %7, %8 : vector<8x512xf32>
    %10 = arith.addf %3, %9 : vector<8x512xf32>
    %11 = vector.broadcast %1 : f32 to vector<8x512xf32>
    %12 = arith.cmpf ogt, %10, %11 : vector<8x512xf32>
    %13 = arith.extui %12 : vector<8x512xi1> to vector<8x512xi32>
    %14 = arith.sitofp %13 : vector<8x512xi32> to vector<8x512xf32>
    %c0_4 = arith.constant 0 : index
    %c0_5 = arith.constant 0 : index
    %15 = vector.load %arg4[%c0_4, %c0_5] : memref<8x512xf32, #tpu.memory_space<vmem>>, vector<8x512xf32>
    tpu.vector_store %arg4[%c0_4, %c0_5], %14 {strides = array<i32>} : memref<8x512xf32, #tpu.memory_space<vmem>>, vector<8x512xf32>,
    %16 = vector.broadcast %2 : f32 to vector<8x512xf32>
    %17 = arith.select %12, %16, %10 : vector<8x512xi1>, vector<8x512xf32>
    %c0_6 = arith.constant 0 : index
    %c0_7 = arith.constant 0 : index
    %18 = vector.load %arg5[%c0_6, %c0_7] : memref<8x512xf32, #tpu.memory_space<vmem>>, vector<8x512xf32>
    tpu.vector_store %arg5[%c0_6, %c0_7], %17 {strides = array<i32>} : memref<8x512xf32, #tpu.memory_space<vmem>>, vector<8x512xf32>,
    return
  }
  func.func @transform_0(%arg0: i32) -> i32 {
    %c0_i32 = arith.constant 0 : i32
    %c0_i32_0 = arith.constant 0 : i32
    return %c0_i32 : i32
  }
  func.func @transform_1(%arg0: i32) -> (i32, i32) {
    %c0_i32 = arith.constant 0 : i32
    %c0_i32_0 = arith.constant 0 : i32
    return %arg0, %c0_i32 : i32, i32
  }
  func.func @transform_2(%arg0: i32) -> (i32, i32) {
    %c0_i32 = arith.constant 0 : i32
    %c0_i32_0 = arith.constant 0 : i32
    return %arg0, %c0_i32 : i32, i32
  }
  func.func @transform_3(%arg0: i32) -> (i32, i32) {
    %c0_i32 = arith.constant 0 : i32
    %c0_i32_0 = arith.constant 0 : i32
    return %arg0, %c0_i32 : i32, i32
  }
  func.func @transform_4(%arg0: i32) -> (i32, i32) {
    %c0_i32 = arith.constant 0 : i32
    %c0_i32_0 = arith.constant 0 : i32
    return %arg0, %c0_i32 : i32, i32
  }
}

</mosaic_0001>

<llo_original>
// kernel: tpu_custom_call.1
$region0: #{tpu_custom_call.1}
  #allocation0 [shape = 'u32[]', space=smem, size = 0x4, offset = 0x4, fixed_abs, tag = 'smem constant byte address 0x4 - core index']
  #allocation1 [shape = 'u32[72,128]{1,0:T(1,128)}', space=vmem, size = 0x9000, scoped, tag = 'internal scratch']
  %s0 = inlined_call_operand.hbm [shape: f32[3], index: 0, kind: input, shape index: {}]
  %s1 = inlined_call_operand.hbm [shape: f32[8,512], index: 1, kind: input, shape index: {}]
  %s2 = inlined_call_operand.hbm [shape: f32[8,512], index: 2, kind: input, shape index: {}]
  %s3 = inlined_call_operand.hbm [shape: f32[8,512], index: 3, kind: output, shape index: {0}]
  %s4 = inlined_call_operand.hbm [shape: f32[8,512], index: 4, kind: output, shape index: {1}]
  %5 = xla_tuple %s3, %s4
  %s6 = sld [smem:[#allocation0]]
  $region42: #{tpu_custom_call.1} parent=0
    _
  %s8 = ssub.s32 1, %s6
  %s9 = scalar_select 0, %s8, %s6
  $region1: #{tpu_custom_call.1} parent=0
    #allocation2 [shape = 'u8[512]{0}', space=smem, size = 0x200, scoped, tag = 'input window, operand 0, single buffered']
    #allocation3 [shape = 's32[1]{0}', space=sflag, size = 0x4, scoped, tag = 'scoped memory for tpu_custom_call.1']
    #allocation4 [shape = 's32[1]{0}', space=sflag, size = 0x4, scoped, tag = 'scoped memory for tpu_custom_call.1']
    #allocation5 [shape = 's32[1]{0}', space=sflag, size = 0x4, scoped, tag = 'scoped memory for tpu_custom_call.1']
    #allocation6 [shape = 'u8[16384]{0}', space=vmem, size = 0x4000, scoped, tag = 'input window, operand 1, single buffered']
    #allocation7 [shape = 'u8[16384]{0}', space=vmem, size = 0x4000, scoped, tag = 'input window, operand 2, single buffered']
    #allocation8 [shape = 's32[1]{0}', space=sflag, size = 0x4, scoped, tag = 'scoped memory for tpu_custom_call.1']
    #allocation9 [shape = 'u8[16384]{0}', space=vmem, size = 0x4000, scoped, tag = 'output window, operand 0, single buffered']
    #allocation10 [shape = 'u8[16384]{0}', space=vmem, size = 0x4000, scoped, tag = 'output window, operand 1, single buffered']
    #allocation11 [shape = 's32[1]{0}', space=sflag, size = 0x4, scoped, tag = 'scoped memory for tpu_custom_call.1']
    %10 = vsyncpa [#allocation5], 0
    %11 = vsyncpa [#allocation3], 0
    %12 = vsyncpa [#allocation8], 0
    %13 = vsyncpa [#allocation4], 0
    %14 = vsyncpa [#allocation11], 0
    // Predicated region
    $region2: #{tpu_custom_call.1} parent=1 // pred_check
      _
    $region3: #{tpu_custom_call.1} parent=1 // pred_check_branch
      %16 = sbr.rel (0) target = $region5
    $region4: #{tpu_custom_call.1} parent=1 // pred_region
      %18 = vsyncadd [#allocation5], 0
      %s20 = sshll.u32 %s0, 4
      %s21 = int_to_ptr.hbm [resolvable:$true] %s20
      %23 = dma.hbm_to_smem %s21, 16, [#allocation2], [#allocation5]
    $region5: #{tpu_custom_call.1} parent=1 // pred_fallthru
      _
    // Predicated region
    $region6: #{tpu_custom_call.1} parent=1 // pred_check
      _
    $region7: #{tpu_custom_call.1} parent=1 // pred_check_branch
      %25 = sbr.rel (0) target = $region9
    $region8: #{tpu_custom_call.1} parent=1 // pred_region
      %27 = vsyncadd [#allocation3], 0
      %s29 = sshll.u32 %s1, 4
      %s30 = int_to_ptr.hbm [resolvable:$true] %s29
      %s31 = sshll.u32 [#allocation6], 4
      %s32 = int_to_ptr.vmem [resolvable:$true] %s31
      %34 = dma.hbm_to_vmem [thread:$0]  %s30, 512, %s32, [#allocation3]
    $region9: #{tpu_custom_call.1} parent=1 // pred_fallthru
      _
    // Predicated region
    $region10: #{tpu_custom_call.1} parent=1 // pred_check
      _
    $region11: #{tpu_custom_call.1} parent=1 // pred_check_branch
      %36 = sbr.rel (0) target = $region13
    $region12: #{tpu_custom_call.1} parent=1 // pred_region
      %38 = vsyncadd [#allocation8], 0
      %s40 = sshll.u32 %s2, 4
      %s41 = int_to_ptr.hbm [resolvable:$true] %s40
      %s42 = sshll.u32 [#allocation7], 4
      %s43 = int_to_ptr.vmem [resolvable:$true] %s42
      %45 = dma.hbm_to_vmem [thread:$0]  %s41, 512, %s43, [#allocation8]
    $region13: #{tpu_custom_call.1} parent=1 // pred_fallthru
      _
    // Predicated region
    $region14: #{tpu_custom_call.1} parent=1 // pred_check
      _
    $region15: #{tpu_custom_call.1} parent=1 // pred_check_branch
      %47 = sbr.rel (0) target = $region17
    $region16: #{tpu_custom_call.1} parent=1 // pred_region
      %49 = dma.done [#allocation5], 16
    $region17: #{tpu_custom_call.1} parent=1 // pred_fallthru
      _
    // Predicated region
    $region18: #{tpu_custom_call.1} parent=1 // pred_check
      _
    $region19: #{tpu_custom_call.1} parent=1 // pred_check_branch
      %51 = sbr.rel (0) target = $region21
    $region20: #{tpu_custom_call.1} parent=1 // pred_region
      %53 = dma.done [#allocation3], 512
    $region21: #{tpu_custom_call.1} parent=1 // pred_fallthru
      _
    // Predicated region
    $region22: #{tpu_custom_call.1} parent=1 // pred_check
      _
    $region23: #{tpu_custom_call.1} parent=1 // pred_check_branch
      %55 = sbr.rel (0) target = $region25
    $region24: #{tpu_custom_call.1} parent=1 // pred_region
      %57 = dma.done [#allocation8], 512
    $region25: #{tpu_custom_call.1} parent=1 // pred_fallthru
      _
    %58 = sfence
    %s59 = sld [smem:[#allocation2]]
    %s60 = sld [smem:[#allocation2 + $0x1]]
    %s61 = sld [smem:[#allocation2 + $0x2]]
    %v62 = vld [vmem:[#allocation6] sm:$0xff]
    %v63 = vld [vmem:[#allocation6 + $0x8] sm:$0xff]
    %v64 = vld [vmem:[#allocation6 + $0x10] sm:$0xff]
    %v65 = vld [vmem:[#allocation6 + $0x18] sm:$0xff]
    %v66 = vld [vmem:[#allocation7] sm:$0xff]
    %v67 = vld [vmem:[#allocation7 + $0x8] sm:$0xff]
    %v68 = vld [vmem:[#allocation7 + $0x10] sm:$0xff]
    %v69 = vld [vmem:[#allocation7 + $0x18] sm:$0xff]
    %v70 = vstv %s61
    %v71 = vsub.f32 %v62, %v70
    %v72 = vsub.f32 %v63, %v70
    %v73 = vsub.f32 %v64, %v70
    %v74 = vsub.f32 %v65, %v70
    %v75 = vsub.f32 %v66, %v71
    %v76 = vsub.f32 %v67, %v72
    %v77 = vsub.f32 %v68, %v73
    %v78 = vsub.f32 %v69, %v74
    %v79 = vstv %s59
    %v80 = vmul.f32 %v75, %v79
    %v81 = vmul.f32 %v76, %v79
    %v82 = vmul.f32 %v77, %v79
    %v83 = vmul.f32 %v78, %v79
    %v84 = vadd.f32 %v62, %v80
    %v85 = vadd.f32 %v63, %v81
    %v86 = vadd.f32 %v64, %v82
    %v87 = vadd.f32 %v65, %v83
    %v88 = vstv %s60
    %vm89 = vcmp.gt.f32.partialorder %v84, %v88
    %vm90 = vcmp.gt.f32.partialorder %v85, %v88
    %vm91 = vcmp.gt.f32.partialorder %v86, %v88
    %vm92 = vcmp.gt.f32.partialorder %v87, %v88
    %v93 = vsel %vm89, 1, 0
    %v94 = vsel %vm90, 1, 0
    %v95 = vsel %vm91, 1, 0
    %v96 = vsel %vm92, 1, 0
    %v97 = vcvt.s32.f32 %v93
    %v98 = vcvt.s32.f32 %v94
    %v99 = vcvt.s32.f32 %v95
    %v100 = vcvt.s32.f32 %v96
    %101 = vst [vmem:[#allocation9] sm:$0xff] %v97
    %102 = vst [vmem:[#allocation9 + $0x8] sm:$0xff] %v98
    %103 = vst [vmem:[#allocation9 + $0x10] sm:$0xff] %v99
    %104 = vst [vmem:[#allocation9 + $0x18] sm:$0xff] %v100
    %v105 = vsel %vm89, %v70, %v84
    %v106 = vsel %vm90, %v70, %v85
    %v107 = vsel %vm91, %v70, %v86
    %v108 = vsel %vm92, %v70, %v87
    %109 = vst [vmem:[#allocation10] sm:$0xff] %v105
    %110 = vst [vmem:[#allocation10 + $0x8] sm:$0xff] %v106
    %111 = vst [vmem:[#allocation10 + $0x10] sm:$0xff] %v107
    %112 = vst [vmem:[#allocation10 + $0x18] sm:$0xff] %v108
    // Predicated region
    $region26: #{tpu_custom_call.1} parent=1 // pred_check
      _
    $region27: #{tpu_custom_call.1} parent=1 // pred_check_branch
      %114 = sbr.rel (0) target = $region29
    $region28: #{tpu_custom_call.1} parent=1 // pred_region
      %116 = vsyncadd [#allocation4], 0
      %s118 = sshll.u32 [#allocation9], 4
      %s119 = int_to_ptr.vmem [resolvable:$true] %s118
      %s120 = sshll.u32 %s3, 4
      %s121 = int_to_ptr.hbm [resolvable:$true] %s120
      %123 = dma.vmem_to_hbm [thread:$0]  %s119, 512, %s121, [#allocation4]
    $region29: #{tpu_custom_call.1} parent=1 // pred_fallthru
      _
    // Predicated region
    $region30: #{tpu_custom_call.1} parent=1 // pred_check
      _
    $region31: #{tpu_custom_call.1} parent=1 // pred_check_branch
      %125 = sbr.rel (0) target = $region33
    $region32: #{tpu_custom_call.1} parent=1 // pred_region
      %127 = vsyncadd [#allocation11], 0
      %s129 = sshll.u32 [#allocation10], 4
      %s130 = int_to_ptr.vmem [resolvable:$true] %s129
      %s131 = sshll.u32 %s4, 4
      %s132 = int_to_ptr.hbm [resolvable:$true] %s131
      %134 = dma.vmem_to_hbm [thread:$0]  %s130, 512, %s132, [#allocation11]
    $region33: #{tpu_custom_call.1} parent=1 // pred_fallthru
      _
    // Predicated region
    $region34: #{tpu_custom_call.1} parent=1 // pred_check
      _
    $region35: #{tpu_custom_call.1} parent=1 // pred_check_branch
      %136 = sbr.rel (0) target = $region37
    $region36: #{tpu_custom_call.1} parent=1 // pred_region
      %138 = dma.done [#allocation4], 512
    $region37: #{tpu_custom_call.1} parent=1 // pred_fallthru
      _
    // Predicated region
    $region38: #{tpu_custom_call.1} parent=1 // pred_check
      _
    $region39: #{tpu_custom_call.1} parent=1 // pred_check_branch
      %140 = sbr.rel (0) target = $region41
    $region40: #{tpu_custom_call.1} parent=1 // pred_region
      %142 = dma.done [#allocation11], 512
    $region41: #{tpu_custom_call.1} parent=1 // pred_fallthru
      _
    %143 = vsyncpa [#allocation3], 1
    %144 = vsyncpa [#allocation8], 1
    %145 = vsyncpa [#allocation4], 1
    %146 = vsyncpa [#allocation11], 1
    %147 = vsyncpa [#allocation5], 1

</llo_original>
